<compile_context>
chip_gen: v7x
topology: tpu7x:2x2x1
jax: 0.10.0
libtpu: 0.0.40
codegen_flags: <defaults>
</compile_context>

<pallas_src>
import math

import jax
import jax.numpy as jnp
from jax.experimental import pallas as pl
from jax.experimental.pallas import tpu as pltpu

_MIB = 1024 * 1024


def _cdiv(a, b):
    return (a + b - 1) // b


def _round_up(x, m):
    return ((x + m - 1) // m) * m


def _balanced_tile(dim, tile_max, align):
    """Smallest aligned tile with ceil(dim/tile) == ceil(dim/tile_max).

    Keeps padding bounded (e.g. dim=300, tile_max=512 -> tile=304, pad=4
    instead of tile=512, pad=212)."""
    blocks = max(1, _cdiv(dim, tile_max))
    tile = _round_up(_cdiv(dim, blocks), align)
    return tile, blocks * tile  # (tile, padded_dim)


def _vmem_budget_bytes():
    """3/4 of physical per-core VMEM, capped at 96 MiB.

    ~96 MiB on v5e/v6e (128 MiB physical), ~48 MiB on v7x (64 MiB physical).
    Conservative 64 MiB assumption when the chip cannot be identified."""
    capacity = None
    try:
        capacity = int(pltpu.get_tpu_info().vmem_capacity_bytes)
    except Exception:
        capacity = None
    if not capacity:
        try:
            kind = jax.devices()[0].device_kind.lower()
        except Exception:
            kind = ""
        if ("v5" in kind) or ("v6" in kind):
            capacity = 128 * _MIB
        else:
            capacity = 64 * _MIB
    return min(96 * _MIB, (capacity * 3) // 4)


def _footprint_bytes(tm, tn, tk, x_bytes, w_bytes, w_buffers):
    return (2 * tm * tk * x_bytes        # x tiles, double-buffered
            + w_buffers * tk * tn * w_bytes  # weight tiles
            + 2 * tm * tn * 4            # f32 output/accumulator tiles
            + 2 * 8 * tn * 4)            # bias row (sublane-padded), 2 bufs


def _linear_kernel(x_ref, w_ref, b_ref, o_ref):
    # x_ref: (tm, tk)  w_ref: (tk, tn)  b_ref: (1, tn)  o_ref: (tm, tn) f32
    # o_ref's block index is constant over k -> it stays VMEM-resident and is
    # used directly as the accumulator (no separate scratch).
    k = pl.program_id(2)

    @pl.when(k == 0)
    def _():
        o_ref[...] = jnp.zeros_like(o_ref)

    o_ref[...] += jnp.dot(x_ref[...], w_ref[...],
                          preferred_element_type=jnp.float32)

    @pl.when(k == pl.num_programs(2) - 1)
    def _():
        o_ref[...] = o_ref[...] + b_ref[...]   # bias added exactly once


def prepare_linear_params(weight, bias=None, *, operand_dtype=None,
                          tn_max=1024, tk_max=1024, tm_hint=512,
                          weight_buffers=2):
    """One-time parameter staging (the device-side analogue of .to(device)).

    weight: (N, K) PyTorch layout; bias: (N,) or None.
    Transposes to MXU-native (K, N), pads K/N to the chosen tile grid and
    optionally casts to a bf16 operand dtype -- done once so the per-call
    forward never re-reads/re-writes the full weight in HBM.
    """
    N, K = weight.shape
    op_dtype = jnp.dtype(operand_dtype) if operand_dtype is not None \
        else jnp.dtype(weight.dtype)
    x_bytes = w_bytes = op_dtype.itemsize

    budget = _vmem_budget_bytes()

    tn, Np = _balanced_tile(N, tn_max, 128)
    tk, Kp = _balanced_tile(K, tk_max, 128)

    # Shrink tn/tk (largest first) until tiles fit the per-core VMEM budget
    # even with a full tm_hint-sized output tile (matters on v7x's 64 MiB).
    while (_footprint_bytes(tm_hint, tn, tk, x_bytes, w_bytes, weight_buffers)
           > budget) and max(tn, tk) > 128:
        if tk >= tn and tk > 128:
            tk, Kp = _balanced_tile(K, max(128, tk // 2), 128)
        else:
            tn, Np = _balanced_tile(N, max(128, tn // 2), 128)

    # v7x has 2 TensorCores: if N fits in one tile, split it in two (only when
    # that adds no padding) so both cores get a parallel block even when M is
    # also a single tile.
    if (Np // tn) < 2 and Np >= 256 and Np % 256 == 0:
        tn = Np // 2
    # TODO(synk): a K-split-across-cores path would cover the remaining
    # single-parallel-block shapes on v7x.

    w_kn = jnp.asarray(weight).astype(op_dtype).T          # (K, N), MXU-native
    if (Kp, Np) != (K, N):
        w_kn = jnp.pad(w_kn, ((0, Kp - K), (0, Np - N)))

    if bias is None:
        b_row = jnp.zeros((1, Np), jnp.float32)
    else:
        b_row = jnp.asarray(bias, jnp.float32).reshape(1, N)
        if Np != N:
            b_row = jnp.pad(b_row, ((0, 0), (0, Np - N)))

    return dict(w_kn=w_kn, b_row=b_row, N=N, K=K, Np=Np, Kp=Kp,
                tn=tn, tk=tk, operand_dtype=op_dtype,
                weight_buffers=weight_buffers, vmem_budget=budget)


def linear_pinned_forward(x, params, *, tm_max=512):
    """y = x @ W.T + b over the last dim of x (same semantics as F.linear)."""
    N, K = params["N"], params["K"]
    Np, Kp = params["Np"], params["Kp"]
    tn, tk = params["tn"], params["tk"]
    op_dtype = params["operand_dtype"]
    w_buffers = params["weight_buffers"]
    budget = params["vmem_budget"]

    orig_shape = x.shape
    assert orig_shape[-1] == K, "x last dim must equal in_features"
    x2 = x.reshape(-1, K)
    M = x2.shape[0]

    x_bytes = op_dtype.itemsize
    tm, Mp = _balanced_tile(M, tm_max, 8)
    while (_footprint_bytes(tm, tn, tk, x_bytes, x_bytes, w_buffers) > budget
           and tm > 8):
        tm_max = max(8, tm_max // 2)
        tm, Mp = _balanced_tile(M, tm_max, 8)

    xp = x2.astype(op_dtype)
    if (Mp, Kp) != (M, K):
        xp = jnp.pad(xp, ((0, Mp - M), (0, Kp - K)))

    grid = (Mp // tm, Np // tn, Kp // tk)

    w_spec_kwargs = {}
    if w_buffers != 2:
        w_spec_kwargs["pipeline_mode"] = pl.Buffered(w_buffers)

    out = pl.pallas_call(
        _linear_kernel,
        out_shape=jax.ShapeDtypeStruct((Mp, Np), jnp.float32),
        grid_spec=pltpu.PrefetchScalarGridSpec(
            num_scalar_prefetch=0,
            grid=grid,
            in_specs=[
                pl.BlockSpec((tm, tk), lambda i, j, k: (i, k)),     # x tile
                pl.BlockSpec((tk, tn), lambda i, j, k: (k, j),      # W.T tile
                             **w_spec_kwargs),
                pl.BlockSpec((1, tn), lambda i, j, k: (0, j)),      # bias, K-resident
            ],
            out_specs=pl.BlockSpec((tm, tn), lambda i, j, k: (i, j)),
        ),
        compiler_params=pltpu.CompilerParams(
            dimension_semantics=("parallel", "parallel", "arbitrary"),
            vmem_limit_bytes=budget,
        ),
    )(xp, params["w_kn"], params["b_row"])

    out = out[:M, :N].astype(x.dtype)
    return out.reshape(*orig_shape[:-1], N)


def init_linear_params(key, in_features, out_features):
    """Mirror the PyTorch init: kaiming_uniform_(a=sqrt(5)) ->
    U(-1/sqrt(fan_in), 1/sqrt(fan_in)) for weight; same bound for bias."""
    # TODO(synk): pinned-memory buffers (_params/_grads, .to() staging,
    # release_gpu_memory) are host-memory management with no Pallas equivalent.
    kw, kb = jax.random.split(key)
    bound = 1.0 / math.sqrt(in_features) if in_features > 0 else 0.0
    weight = jax.random.uniform(
        kw, (out_features, in_features), jnp.float32, -bound, bound)
    bias = jax.random.uniform(
        kb, (out_features,), jnp.float32, -bound, bound)
    return weight, bias


if __name__ == "__main__":
    key = jax.random.PRNGKey(0)
    k1, k2, k3, k4, k5, k6 = jax.random.split(key, 6)

    # 1) Small module-like shapes with a 3-D input (batch=2, seq=8, 32 -> 64).
    batch, seq, in_f, out_f = 2, 8, 32, 64
    x = jax.random.normal(k1, (batch, seq, in_f), jnp.float32)
    w, b = init_linear_params(k2, in_f, out_f)
    prep = prepare_linear_params(w, b)
    y = jax.block_until_ready(linear_pinned_forward(x, prep))
    y_ref = x @ w.T + b
    assert y.shape == (batch, seq, out_f)
    assert jnp.allclose(y, y_ref, atol=1e-4, rtol=1e-5)

    # 2) Non-aligned shape exercising the multi-step K reduction, bias-once,
    #    and the balanced (bounded-padding) tile selection.
    M2, K2, N2 = 300, 200, 260
    x2 = jax.random.normal(k3, (M2, K2), jnp.float32)
    w2, b2 = init_linear_params(k4, K2, N2)
    prep2 = prepare_linear_params(w2, b2, tn_max=128, tk_max=128)
    y2 = jax.block_until_ready(linear_pinned_forward(x2, prep2, tm_max=128))
    y2_ref = x2 @ w2.T + b2
    assert y2.shape == (M2, N2)
    assert jnp.allclose(y2, y2_ref, atol=1e-4, rtol=1e-5)

    # 3) bf16-operand path (f32 accumulation, f32 output) — looser tolerance
    #    vs. the f32 reference; also exercises the megacore N-split (2 blocks).
    M3, K3, N3 = 256, 256, 512
    x3 = jax.random.normal(k5, (M3, K3), jnp.float32)
    w3, b3 = init_linear_params(k6, K3, N3)
    prep3 = prepare_linear_params(w3, b3, operand_dtype=jnp.bfloat16)
    y3 = jax.block_until_ready(linear_pinned_forward(x3, prep3))
    y3_ref = x3 @ w3.T + b3
    assert y3.shape == (M3, N3)
    assert jnp.allclose(y3, y3_ref, atol=5e-2, rtol=5e-2)

    print("KERNEL_OK")
</pallas_src>

<mosaic_0001>
module attributes {stable_mosaic.version = 11 : i64} {
  func.func @_linear_kernel(%arg0: i32, %arg1: i32, %arg2: i32, %arg3: memref<16x128xf32, #tpu.memory_space<vmem>>, %arg4: memref<128x128xf32, #tpu.memory_space<vmem>>, %arg5: memref<1x128xf32, #tpu.memory_space<vmem>>, %arg6: memref<16x128xf32, #tpu.memory_space<vmem>>) attributes {dimension_semantics = [#tpu.dimension_semantics<parallel>, #tpu.dimension_semantics<parallel>, #tpu.dimension_semantics<arbitrary>], iteration_bounds = array<i64: 1, 1, 1>, scalar_prefetch = 0 : i64, scratch_operands = 0 : i64, tpu.core_type = #tpu.core_type<tc>, window_params = [{transform_indices = @transform_0, window_bounds = array<i64: 16, 128>}, {transform_indices = @transform_1, window_bounds = array<i64: 128, 128>}, {transform_indices = @transform_2, window_bounds = array<i64: 1, 128>}, {transform_indices = @transform_3, window_bounds = array<i64: 16, 128>}]} {
    %c0_i32 = arith.constant 0 : i32
    %0 = arith.cmpi eq, %arg2, %c0_i32 : i32
    %1 = arith.extui %0 : i1 to i32
    %c0_i32_0 = arith.constant 0 : i32
    %2 = arith.cmpi ne, %1, %c0_i32_0 : i32
    scf.if %2 {
      %cst_10 = arith.constant 0.000000e+00 : f32
      %12 = vector.broadcast %cst_10 : f32 to vector<16x128xf32>
      %c0_11 = arith.constant 0 : index
      %c0_12 = arith.constant 0 : index
      %13 = vector.load %arg6[%c0_11, %c0_12] : memref<16x128xf32, #tpu.memory_space<vmem>>, vector<16x128xf32>
      tpu.vector_store %arg6[%c0_11, %c0_12], %12 {strides = array<i32>} : memref<16x128xf32, #tpu.memory_space<vmem>>, vector<16x128xf32>,
    } else {
    }
    %c0 = arith.constant 0 : index
    %c0_1 = arith.constant 0 : index
    %3 = vector.load %arg6[%c0, %c0_1] : memref<16x128xf32, #tpu.memory_space<vmem>>, vector<16x128xf32>
    %c0_2 = arith.constant 0 : index
    %c0_3 = arith.constant 0 : index
    %4 = vector.load %arg3[%c0_2, %c0_3] : memref<16x128xf32, #tpu.memory_space<vmem>>, vector<16x128xf32>
    %c0_4 = arith.constant 0 : index
    %c0_5 = arith.constant 0 : index
    %5 = vector.load %arg4[%c0_4, %c0_5] : memref<128x128xf32, #tpu.memory_space<vmem>>, vector<128x128xf32>
    %cst = arith.constant dense<0.000000e+00> : vector<16x128xf32>
    %6 = tpu.matmul %4, %5, %cst {dimension_numbers = #tpu.dot_dimension_numbers<[1], [0], [0], [1], [0, 0, 1, 1], [], []>} : vector<16x128xf32>, vector<128x128xf32>, vector<16x128xf32> -> vector<16x128xf32>
    %7 = arith.addf %3, %6 : vector<16x128xf32>
    %c0_6 = arith.constant 0 : index
    %c0_7 = arith.constant 0 : index
    %8 = vector.load %arg6[%c0_6, %c0_7] : memref<16x128xf32, #tpu.memory_space<vmem>>, vector<16x128xf32>
    tpu.vector_store %arg6[%c0_6, %c0_7], %7 {strides = array<i32>} : memref<16x128xf32, #tpu.memory_space<vmem>>, vector<16x128xf32>,
    %c0_i32_8 = arith.constant 0 : i32
    %9 = arith.cmpi eq, %arg2, %c0_i32_8 : i32
    %10 = arith.extui %9 : i1 to i32
    %c0_i32_9 = arith.constant 0 : i32
    %11 = arith.cmpi ne, %10, %c0_i32_9 : i32
    scf.if %11 {
      %c0_10 = arith.constant 0 : index
      %c0_11 = arith.constant 0 : index
      %12 = vector.load %arg6[%c0_10, %c0_11] : memref<16x128xf32, #tpu.memory_space<vmem>>, vector<16x128xf32>
      %c0_12 = arith.constant 0 : index
      %c0_13 = arith.constant 0 : index
      %13 = vector.load %arg5[%c0_12, %c0_13] : memref<1x128xf32, #tpu.memory_space<vmem>>, vector<1x128xf32>
      %14 = vector.broadcast %13 : vector<1x128xf32> to vector<16x128xf32>
      %15 = arith.addf %12, %14 : vector<16x128xf32>
      %c0_14 = arith.constant 0 : index
      %c0_15 = arith.constant 0 : index
      %16 = vector.load %arg6[%c0_14, %c0_15] : memref<16x128xf32, #tpu.memory_space<vmem>>, vector<16x128xf32>
      tpu.vector_store %arg6[%c0_14, %c0_15], %15 {strides = array<i32>} : memref<16x128xf32, #tpu.memory_space<vmem>>, vector<16x128xf32>,
    } else {
    }
    return
  }
  func.func @transform_0(%arg0: i32, %arg1: i32, %arg2: i32) -> (i32, i32) {
    %c0_i32 = arith.constant 0 : i32
    return %arg0, %arg2 : i32, i32
  }
  func.func @transform_1(%arg0: i32, %arg1: i32, %arg2: i32) -> (i32, i32) {
    %c0_i32 = arith.constant 0 : i32
    return %arg2, %arg1 : i32, i32
  }
  func.func @transform_2(%arg0: i32, %arg1: i32, %arg2: i32) -> (i32, i32) {
    %c0_i32 = arith.constant 0 : i32
    %c0_i32_0 = arith.constant 0 : i32
    return %c0_i32, %arg1 : i32, i32
  }
  func.func @transform_3(%arg0: i32, %arg1: i32, %arg2: i32) -> (i32, i32) {
    %c0_i32 = arith.constant 0 : i32
    return %arg0, %arg1 : i32, i32
  }
}

</mosaic_0001>

<llo_original>
// kernel: tpu_custom_call.1
$region0: #{tpu_custom_call.1}
  #allocation0 [shape = 'u32[]', space=smem, size = 0x4, offset = 0x4, fixed_abs, tag = 'smem constant byte address 0x4 - core index']
  #allocation1 [shape = 'u32[144,128]{1,0:T(1,128)}', space=vmem, size = 0x12000, scoped, tag = 'internal scratch']
  %s0 = inlined_call_operand.hbm [shape: f32[16,128], index: 0, kind: input, shape index: {}]
  %s1 = inlined_call_operand.hbm [shape: f32[128,128], index: 1, kind: input, shape index: {}]
  %s2 = inlined_call_operand.vmem [shape: f32[1,128], index: 2, kind: input, shape index: {}]
  %s3 = inlined_call_operand.hbm [shape: f32[16,128], index: 3, kind: output, shape index: {}]
  %s4 = sld [smem:[#allocation0]]
  $region38: #{tpu_custom_call.1} parent=0
    _
  %s6 = ssub.s32 1, %s4
  %s7 = scalar_select 0, %s6, %s4
  $region1: #{tpu_custom_call.1} parent=0
    #allocation2 [shape = 'u8[8192]{0}', space=vmem, size = 0x2000, scoped, tag = 'input window, operand 0, single buffered']
    #allocation3 [shape = 's32[1]{0}', space=sflag, size = 0x4, scoped, tag = 'scoped memory for tpu_custom_call.1']
    #allocation4 [shape = 's32[1]{0}', space=sflag, size = 0x4, scoped, tag = 'scoped memory for tpu_custom_call.1']
    #allocation5 [shape = 'u8[65536]{0}', space=vmem, size = 0x10000, scoped, tag = 'input window, operand 1, single buffered']
    #allocation6 [shape = 's32[1]{0}', space=sflag, size = 0x4, scoped, tag = 'scoped memory for tpu_custom_call.1']
    #allocation7 [shape = 'u8[8192]{0}', space=vmem, size = 0x2000, scoped, tag = 'output window, operand 0, single buffered']
    %8 = vsyncpa [#allocation3], 0
    %9 = vsyncpa [#allocation6], 0
    %10 = vsyncpa [#allocation4], 0
    // Predicated region
    $region2: #{tpu_custom_call.1} parent=1 // pred_check
      _
    $region3: #{tpu_custom_call.1} parent=1 // pred_check_branch
      %12 = sbr.rel (0) target = $region5
    $region4: #{tpu_custom_call.1} parent=1 // pred_region
      %s14 = ssub.s32 256, 256
      %15 = vsyncadd [#allocation3], %s14
      %s16 = sshll.u32 [#allocation2], 4
      %s17 = int_to_ptr.vmem [resolvable:$true] %s16
      %22 = dma.hbm_to_vmem [thread:$0]  %s0, 256, %s17, [#allocation3], 128, 128, 8
    $region5: #{tpu_custom_call.1} parent=1 // pred_fallthru
      _
    // Predicated region
    $region6: #{tpu_custom_call.1} parent=1 // pred_check
      _
    $region7: #{tpu_custom_call.1} parent=1 // pred_check_branch
      %24 = sbr.rel (0) target = $region9
    $region8: #{tpu_custom_call.1} parent=1 // pred_region
      %s26 = ssub.s32 2048, 2048
      %27 = vsyncadd [#allocation6], %s26
      %s28 = sshll.u32 [#allocation5], 4
      %s29 = int_to_ptr.vmem [resolvable:$true] %s28
      %34 = dma.hbm_to_vmem [thread:$0]  %s1, 2048, %s29, [#allocation6], 128, 128, 8
    $region9: #{tpu_custom_call.1} parent=1 // pred_fallthru
      _
    // Predicated region
    $region10: #{tpu_custom_call.1} parent=1 // pred_check
      _
    $region11: #{tpu_custom_call.1} parent=1 // pred_check_branch
      %36 = sbr.rel (0) target = $region13
    $region12: #{tpu_custom_call.1} parent=1 // pred_region
      _
    $region13: #{tpu_custom_call.1} parent=1 // pred_fallthru
      _
    // Predicated region
    $region14: #{tpu_custom_call.1} parent=1 // pred_check
      _
    $region15: #{tpu_custom_call.1} parent=1 // pred_check_branch
      %38 = sbr.rel (0) target = $region17
    $region16: #{tpu_custom_call.1} parent=1 // pred_region
      %39 = dma.done [#allocation3], 256
    $region17: #{tpu_custom_call.1} parent=1 // pred_fallthru
      _
    // Predicated region
    $region18: #{tpu_custom_call.1} parent=1 // pred_check
      _
    $region19: #{tpu_custom_call.1} parent=1 // pred_check_branch
      %41 = sbr.rel (0) target = $region21
    $region20: #{tpu_custom_call.1} parent=1 // pred_region
      %42 = dma.done [#allocation6], 2048
    $region21: #{tpu_custom_call.1} parent=1 // pred_fallthru
      _
    %p43 = scmp.eq.s32.totalorder 0, 0
    // Predicated region
    $region22: #{tpu_custom_call.1} parent=1 // pred_check
      %p44 = pneg %p43
    $region23: #{tpu_custom_call.1} parent=1 // pred_check_branch
      %46 = sbr.rel (%p44) target = $region25
    $region24: #{tpu_custom_call.1} parent=1 // pred_region
      %47 = vst [vmem:[#allocation7] sm:$0xff] 0.0
      %48 = vst [vmem:[#allocation7 + $0x8] sm:$0xff] 0.0
    $region25: #{tpu_custom_call.1} parent=1 // pred_fallthru
      _
    %v49 = vld [vmem:[#allocation7] sm:$0xff]
    %v50 = vld [vmem:[#allocation7 + $0x8] sm:$0xff]
    %v51 = vld [vmem:[#allocation2] sm:$0xff]
    %v52 = vld [vmem:[#allocation2 + $0x8] sm:$0xff]
    %v53 = vld [vmem:[#allocation5] sm:$0xff]
    %v54 = vld [vmem:[#allocation5 + $0x8] sm:$0xff]
    %v55 = vld [vmem:[#allocation5 + $0x10] sm:$0xff]
    %v56 = vld [vmem:[#allocation5 + $0x18] sm:$0xff]
    %v57 = vld [vmem:[#allocation5 + $0x20] sm:$0xff]
    %v58 = vld [vmem:[#allocation5 + $0x28] sm:$0xff]
    %v59 = vld [vmem:[#allocation5 + $0x30] sm:$0xff]
    %v60 = vld [vmem:[#allocation5 + $0x38] sm:$0xff]
    %v61 = vld [vmem:[#allocation5 + $0x40] sm:$0xff]
    %v62 = vld [vmem:[#allocation5 + $0x48] sm:$0xff]
    %v63 = vld [vmem:[#allocation5 + $0x50] sm:$0xff]
    %v64 = vld [vmem:[#allocation5 + $0x58] sm:$0xff]
    %v65 = vld [vmem:[#allocation5 + $0x60] sm:$0xff]
    %v66 = vld [vmem:[#allocation5 + $0x68] sm:$0xff]
    %v67 = vld [vmem:[#allocation5 + $0x70] sm:$0xff]
    %v68 = vld [vmem:[#allocation5 + $0x78] sm:$0xff]
    %69 = vmatprep.subr.mxu0 0.0
    %70 = vmatpush1.msra.mxu0 %v53
    %71 = vmatprep.subr.mxu0 0.0
    %72 = vmatpush1.msra.mxu0 %v54
    %73 = vmatprep.subr.mxu0 0.0
    %74 = vmatpush1.msra.mxu0 %v55
    %75 = vmatprep.subr.mxu0 0.0
    %76 = vmatpush1.msra.mxu0 %v56
    %77 = vmatprep.subr.mxu0 0.0
    %78 = vmatpush1.msra.mxu0 %v57
    %79 = vmatprep.subr.mxu0 0.0
    %80 = vmatpush1.msra.mxu0 %v58
    %81 = vmatprep.subr.mxu0 0.0
    %82 = vmatpush1.msra.mxu0 %v59
    %83 = vmatprep.subr.mxu0 0.0
    %84 = vmatpush1.msra.mxu0 %v60
    %85 = vmatprep.subr.mxu0 0.0
    %86 = vmatpush1.msra.mxu0 %v61
    %87 = vmatprep.subr.mxu0 0.0
    %88 = vmatpush1.msra.mxu0 %v62
    %89 = vmatprep.subr.mxu0 0.0
    %90 = vmatpush1.msra.mxu0 %v63
    %91 = vmatprep.subr.mxu0 0.0
    %92 = vmatpush1.msra.mxu0 %v64
    %93 = vmatprep.subr.mxu0 0.0
    %94 = vmatpush1.msra.mxu0 %v65
    %95 = vmatprep.subr.mxu0 0.0
    %96 = vmatpush1.msra.mxu0 %v66
    %97 = vmatprep.subr.mxu0 0.0
    %98 = vmatpush1.msra.mxu0 %v67
    %99 = vmatprep.subr.mxu0 0.0
    %100 = vmatpush1.msra.mxu0 %v68
    %101 = vmatprep.subr.mxu0 0.0
    %102 = vmatpush1.msra.mxu0 0.0
    %103 = vmatprep.subr.mxu0 0.0
    %104 = vmatpush1.msra.mxu0 0.0
    %105 = vmatprep.subr.mxu0 0.0
    %106 = vmatpush1.msra.mxu0 0.0
    %107 = vmatprep.subr.mxu0 0.0
    %108 = vmatpush1.msra.mxu0 0.0
    %109 = vmatprep.subr.mxu0 0.0
    %110 = vmatpush1.msra.mxu0 0.0
    %111 = vmatprep.subr.mxu0 0.0
    %112 = vmatpush1.msra.mxu0 0.0
    %113 = vmatprep.subr.mxu0 0.0
    %114 = vmatpush1.msra.mxu0 0.0
    %115 = vmatprep.subr.mxu0 0.0
    %116 = vmatpush1.msra.mxu0 0.0
    %117 = vmatprep.subr.mxu0 0.0
    %118 = vmatpush1.msra.mxu0 0.0
    %119 = vmatprep.subr.mxu0 0.0
    %120 = vmatpush1.msra.mxu0 0.0
    %121 = vmatprep.subr.mxu0 0.0
    %122 = vmatpush1.msra.mxu0 0.0
    %123 = vmatprep.subr.mxu0 0.0
    %124 = vmatpush1.msra.mxu0 0.0
    %125 = vmatprep.subr.mxu0 0.0
    %126 = vmatpush1.msra.mxu0 0.0
    %127 = vmatprep.subr.mxu0 0.0
    %128 = vmatpush1.msra.mxu0 0.0
    %129 = vmatprep.subr.mxu0 0.0
    %130 = vmatpush1.msra.mxu0 0.0
    %131 = vmatprep.subr.mxu0 0.0
    %132 = vmatpush1.msra.mxu0 0.0
    %133 = vmatprep.mubr.f32.mxu0 0.0
    %134 = vmatmul.mubr.f32.gmra.mrb[0].mxu0 %v51
    %v135 = vpop.f32.mrb[0].mxu0
    %v136 = vadd.f32 0.0, %v135
    %v137 = vpop.f32.mrb[0].mxu0
    %138 = vmatprep.mubr.f32.mxu0 0.0
    %139 = vmatmul.mubr.f32.gmra.mrb[0].mxu0 %v52
    %v140 = vpop.f32.mrb[0].mxu0
    %v141 = vadd.f32 0.0, %v140
    %v142 = vpop.f32.mrb[0].mxu0
    %143 = vdwg.mxu0
    %v144 = vadd.f32 %v49, %v136
    %v145 = vadd.f32 %v50, %v141
    %146 = vst [vmem:[#allocation7] sm:$0xff] %v144
    %147 = vst [vmem:[#allocation7 + $0x8] sm:$0xff] %v145
    // Predicated region
    $region26: #{tpu_custom_call.1} parent=1 // pred_check
      %p148 = pneg %p43
    $region27: #{tpu_custom_call.1} parent=1 // pred_check_branch
      %150 = sbr.rel (%p148) target = $region29
    $region28: #{tpu_custom_call.1} parent=1 // pred_region
      %v151 = vld [vmem:[#allocation7] sm:$0xff]
      %v152 = vld [vmem:[#allocation7 + $0x8] sm:$0xff]
      %v153 = vld [vmem:[%s2] sm:$0x1]
      %v155 = vlaneseq
      %v156 = vshrl.u32 %v155, 7
      %v157 = vsub.s32 0, %v156
      %v158 = vrot.slane %v153, %v157
      %v160 = vadd.f32 %v151, %v158
      %v161 = vadd.f32 %v152, %v158
      %162 = vst [vmem:[#allocation7] sm:$0xff] %v160
      %163 = vst [vmem:[#allocation7 + $0x8] sm:$0xff] %v161
    $region29: #{tpu_custom_call.1} parent=1 // pred_fallthru
      _
    // Predicated region
    $region30: #{tpu_custom_call.1} parent=1 // pred_check
      _
    $region31: #{tpu_custom_call.1} parent=1 // pred_check_branch
      %165 = sbr.rel (0) target = $region33
    $region32: #{tpu_custom_call.1} parent=1 // pred_region
      %s167 = ssub.s32 256, 256
      %168 = vsyncadd [#allocation4], %s167
      %s169 = sshll.u32 [#allocation7], 4
      %s170 = int_to_ptr.vmem [resolvable:$true] %s169
      %175 = dma.vmem_to_hbm [thread:$0]  %s170, 256, %s3, [#allocation4], 128, 128, 8
    $region33: #{tpu_custom_call.1} parent=1 // pred_fallthru
      _
    // Predicated region
    $region34: #{tpu_custom_call.1} parent=1 // pred_check
      _
    $region35: #{tpu_custom_call.1} parent=1 // pred_check_branch
      %177 = sbr.rel (0) target = $region37
    $region36: #{tpu_custom_call.1} parent=1 // pred_region
      %178 = dma.done [#allocation4], 256
    $region37: #{tpu_custom_call.1} parent=1 // pred_fallthru
      _
    %179 = vsyncpa [#allocation3], 1
    %180 = vsyncpa [#allocation6], 1
    %181 = vsyncpa [#allocation4], 1

</llo_original>
